<compile_context>
chip_gen: v7x
topology: tpu7x:2x2x1
jax: 0.10.0
libtpu: 0.0.40
codegen_flags: <defaults>
</compile_context>

<pallas_src>
import functools

import jax
import jax.numpy as jnp
import numpy as np
from jax.experimental import pallas as pl
from jax.experimental.pallas import tpu as pltpu


def _round_up(x, m):
    return ((x + m - 1) // m) * m


# --------------------------------------------------------------------------
# Framing (torch.stft defaults: center=True, reflect pad, rectangular window)
# --------------------------------------------------------------------------
def _frame_signal(x, n_fft, hop_length, n_frames):
    """x: (B, C, T) -> (C, B*n_frames, n_fft) float32 frames."""
    B, C, T = x.shape
    pad = n_fft // 2
    xp = jnp.pad(x.astype(jnp.float32), ((0, 0), (0, 0), (pad, pad)),
                 mode="reflect")                         # (B, C, T + n_fft)
    if n_fft % hop_length == 0:
        # Gather-free framing: frame f = concat of n_fft//hop hop-chunks.
        m = n_fft // hop_length
        parts = [
            xp[:, :, j * hop_length: j * hop_length + n_frames * hop_length]
            .reshape(B, C, n_frames, hop_length)
            for j in range(m)
        ]
        frames = jnp.concatenate(parts, axis=-1)         # (B, C, n_frames, n_fft)
    else:
        idx = (np.arange(n_frames)[:, None] * hop_length
               + np.arange(n_fft)[None, :])
        frames = xp[:, :, idx]
    return jnp.transpose(frames, (1, 0, 2, 3)).reshape(C, B * n_frames, n_fft)


# --------------------------------------------------------------------------
# Pallas kernel: fused STFT matmul + unmasked per-bin reductions
# --------------------------------------------------------------------------
def _stft_loss_kernel(pred_ref, tgt_ref, basis_ref, mag_out_ref, ph_out_ref,
                      acc_mag, acc_ph, *, fh_pad):
    r = pl.program_id(1)

    @pl.when(r == 0)
    def _():
        acc_mag[...] = jnp.zeros_like(acc_mag)
        acc_ph[...] = jnp.zeros_like(acc_ph)

    p = pred_ref[0]                      # (tile_r, n_fft) bf16
    t = tgt_ref[0]
    bm = basis_ref[...]                  # (n_fft, 2*fh_pad) bf16

    out_p = jnp.dot(p, bm, preferred_element_type=jnp.float32)
    out_t = jnp.dot(t, bm, preferred_element_type=jnp.float32)

    re_p, im_p = out_p[:, :fh_pad], out_p[:, fh_pad:]
    re_t, im_t = out_t[:, :fh_pad], out_t[:, fh_pad:]

    pp = re_p * re_p + im_p * im_p
    tt = re_t * re_t + im_t * im_t
    acc_mag[...] += jnp.abs(jnp.sqrt(pp) - jnp.sqrt(tt))

    # cos(angle_p - angle_t) = (Re_p*Re_t + Im_p*Im_t) / (|p| |t|).
    # Padded rows / padded bins have num == den == 0 -> contribute 0,
    # so no row/column masking is needed anywhere.
    num = re_p * re_t + im_p * im_t
    den_sq = pp * tt
    acc_ph[...] += num * jax.lax.rsqrt(jnp.where(den_sq > 0.0, den_sq, 1.0))

    @pl.when(r == pl.num_programs(1) - 1)
    def _():
        mag_out_ref[0] = jnp.sum(acc_mag[...], axis=0, keepdims=True)
        ph_out_ref[0] = jnp.sum(acc_ph[...], axis=0, keepdims=True)


def _stft_bin_sums(pred_fr, tgt_fr, n_fft, tile_r):
    """Per-channel sums of |d_mag| and cos(d_phase) over bins 1..n_fft//2."""
    C, R, _ = pred_fr.shape
    F_half = n_fft // 2
    Fh_pad = _round_up(F_half, 128)
    tile_r = max(16, min(_round_up(tile_r, 16), _round_up(R, 16)))
    R_pad = _round_up(R, tile_r)
    num_r_tiles = R_pad // tile_r

    def pad_cast(fr):
        fr = jnp.pad(fr, ((0, 0), (0, R_pad - R), (0, 0)))
        return fr.astype(jnp.bfloat16)

    pred_in = pad_cast(pred_fr)
    tgt_in = pad_cast(tgt_fr)

    # Fused real-DFT basis for bins 1..n_fft//2: [cos | -sin].
    n = np.arange(n_fft)[:, None].astype(np.float64)
    k = np.arange(1, Fh_pad + 1)[None, :].astype(np.float64)
    ang = 2.0 * np.pi * n * k / n_fft
    valid = k <= F_half
    basis_np = np.concatenate([np.where(valid, np.cos(ang), 0.0),
                               np.where(valid, -np.sin(ang), 0.0)], axis=1)
    basis = jnp.asarray(basis_np, dtype=jnp.bfloat16)    # (n_fft, 2*Fh_pad)

    kernel = functools.partial(_stft_loss_kernel, fh_pad=Fh_pad)
    mag_cols, ph_cols = pl.pallas_call(
        kernel,
        out_shape=(jax.ShapeDtypeStruct((C, 1, Fh_pad), jnp.float32),
                   jax.ShapeDtypeStruct((C, 1, Fh_pad), jnp.float32)),
        grid_spec=pltpu.PrefetchScalarGridSpec(
            num_scalar_prefetch=0,
            grid=(C, num_r_tiles),
            in_specs=[
                pl.BlockSpec((1, tile_r, n_fft), lambda c, r: (c, r, 0)),
                pl.BlockSpec((1, tile_r, n_fft), lambda c, r: (c, r, 0)),
                pl.BlockSpec((n_fft, 2 * Fh_pad), lambda c, r: (0, 0)),
            ],
            out_specs=[
                pl.BlockSpec((1, 1, Fh_pad), lambda c, r: (c, 0, 0)),
                pl.BlockSpec((1, 1, Fh_pad), lambda c, r: (c, 0, 0)),
            ],
            scratch_shapes=[pltpu.VMEM((tile_r, Fh_pad), jnp.float32),
                            pltpu.VMEM((tile_r, Fh_pad), jnp.float32)],
        ),
        compiler_params=pltpu.CompilerParams(
            dimension_semantics=("parallel", "arbitrary")),
    )(pred_in, tgt_in, basis)

    return jnp.sum(mag_cols, axis=(1, 2)), jnp.sum(ph_cols, axis=(1, 2))


def _per_channel_losses(pred_fr, tgt_fr, n_fft, tile_r):
    """pred_fr/tgt_fr: (C, R, n_fft). Returns per-channel (mag_loss, phase_loss)."""
    mag_sum, ph_sum = _stft_bin_sums(pred_fr, tgt_fr, n_fft, tile_r)

    # DC bin (k=0, purely real) on tiny (C, R) arrays — exact torch semantics.
    dc_p = jnp.sum(pred_fr, axis=-1)
    dc_t = jnp.sum(tgt_fr, axis=-1)
    mag_sum = mag_sum + jnp.sum(jnp.abs(jnp.abs(dc_p) - jnp.abs(dc_t)), axis=-1)
    ph_sum = ph_sum + jnp.sum(jnp.cos(jnp.angle(dc_p) - jnp.angle(dc_t)), axis=-1)

    n_freq = n_fft // 2 + 1
    n_el = jnp.float32(pred_fr.shape[1] * n_freq)        # elements per channel
    return mag_sum / n_el, 1.0 - ph_sum / n_el


def magnitude_phase_consistency_loss(pred, target, n_fft=1024, hop_length=256,
                                     tile_r=256):
    """JAX/Pallas port of MagnitudePhaseConsistencyLoss.forward."""
    assert n_fft % 2 == 0
    assert pred.shape == target.shape

    # TODO(synk): for very large T, build the overlapped frames in-kernel from
    # contiguous waveform chunks instead of materializing the n_fft/hop-times
    # expanded frame tensor in the wrapper.
    if pred.ndim == 3 and pred.shape[1] == 2:
        # Stereo branch.
        B, C, T = pred.shape
        n_frames = 1 + T // hop_length
        pred_fr = _frame_signal(pred, n_fft, hop_length, n_frames)
        tgt_fr = _frame_signal(target, n_fft, hop_length, n_frames)
        mag_loss, phase_loss = _per_channel_losses(pred_fr, tgt_fr, n_fft, tile_r)
        return jnp.mean(mag_loss) + 0.1 * jnp.mean(phase_loss)

    if pred.ndim in (1, 2):
        # Mono branch (torch.stft accepts (T,) or (B, T)).
        x_p = pred.reshape(1, -1) if pred.ndim == 1 else pred
        x_t = target.reshape(1, -1) if target.ndim == 1 else target
        B, T = x_p.shape
        n_frames = 1 + T // hop_length
        pred_fr = _frame_signal(x_p[:, None, :], n_fft, hop_length, n_frames)
        tgt_fr = _frame_signal(x_t[:, None, :], n_fft, hop_length, n_frames)
        mag_loss, phase_loss = _per_channel_losses(pred_fr, tgt_fr, n_fft, tile_r)
        return mag_loss[0] + 0.1 * phase_loss[0]

    # TODO(synk): torch's try/except zero-fallback (e.g. 3-D non-stereo input,
    # where torch.stft raises) is not replicated.
    raise NotImplementedError("unsupported input rank for this port")


# --------------------------------------------------------------------------
# Pure-JAX references (match torch semantics) for verification
# --------------------------------------------------------------------------
def _reference_stft(x, n_fft, hop_length):
    pad = n_fft // 2
    T = x.shape[-1]
    n_frames = 1 + T // hop_length
    pad_width = [(0, 0)] * (x.ndim - 1) + [(pad, pad)]
    xp = jnp.pad(x.astype(jnp.float32), pad_width, mode="reflect")
    idx = (np.arange(n_frames)[:, None] * hop_length + np.arange(n_fft)[None, :])
    return jnp.fft.rfft(xp[..., idx], axis=-1)


def reference_loss(pred, target, n_fft, hop_length):
    P = _reference_stft(pred, n_fft, hop_length)
    Q = _reference_stft(target, n_fft, hop_length)
    if pred.ndim == 3 and pred.shape[1] == 2:
        red = (0, 2, 3)
        mag = jnp.mean(jnp.abs(jnp.abs(P) - jnp.abs(Q)), axis=red)
        ph = 1.0 - jnp.mean(jnp.cos(jnp.angle(P) - jnp.angle(Q)), axis=red)
        return jnp.mean(mag) + 0.1 * jnp.mean(ph)
    mag = jnp.mean(jnp.abs(jnp.abs(P) - jnp.abs(Q)))
    ph = 1.0 - jnp.mean(jnp.cos(jnp.angle(P) - jnp.angle(Q)))
    return mag + 0.1 * ph


if __name__ == "__main__":
    key = jax.random.PRNGKey(0)
    k1, k2, k3, k4 = jax.random.split(key, 4)
    B, C, T = 2, 2, 1024
    n_fft, hop = 256, 64

    # Stereo path.
    pred = jax.random.normal(k1, (B, C, T), dtype=jnp.float32)
    target = jax.random.normal(k2, (B, C, T), dtype=jnp.float32)
    loss = jax.block_until_ready(
        magnitude_phase_consistency_loss(pred, target, n_fft=n_fft,
                                         hop_length=hop))
    ref = reference_loss(pred, target, n_fft, hop)
    np.testing.assert_allclose(float(loss), float(ref), rtol=2e-2, atol=2e-3)

    # Mono path.
    pred_m = jax.random.normal(k3, (B, T), dtype=jnp.float32)
    tgt_m = jax.random.normal(k4, (B, T), dtype=jnp.float32)
    loss_m = jax.block_until_ready(
        magnitude_phase_consistency_loss(pred_m, tgt_m, n_fft=n_fft,
                                         hop_length=hop))
    ref_m = reference_loss(pred_m, tgt_m, n_fft, hop)
    np.testing.assert_allclose(float(loss_m), float(ref_m), rtol=2e-2, atol=2e-3)

    print("KERNEL_OK")
</pallas_src>

<mosaic_0001>
module attributes {stable_mosaic.version = 11 : i64} {
  func.func @_stft_loss_kernel(%arg0: i32, %arg1: i32, %arg2: memref<1x48x256xbf16, #tpu.memory_space<vmem>>, %arg3: memref<1x48x256xbf16, #tpu.memory_space<vmem>>, %arg4: memref<256x256xbf16, #tpu.memory_space<vmem>>, %arg5: memref<1x1x128xf32, #tpu.memory_space<vmem>>, %arg6: memref<1x1x128xf32, #tpu.memory_space<vmem>>, %arg7: memref<48x128xf32, #tpu.memory_space<vmem>>, %arg8: memref<48x128xf32, #tpu.memory_space<vmem>>) attributes {dimension_semantics = [#tpu.dimension_semantics<parallel>, #tpu.dimension_semantics<arbitrary>], iteration_bounds = array<i64: 2, 1>, scalar_prefetch = 0 : i64, scratch_operands = 2 : i64, tpu.core_type = #tpu.core_type<tc>, window_params = [{transform_indices = @transform_0, window_bounds = array<i64: 1, 48, 256>}, {transform_indices = @transform_1, window_bounds = array<i64: 1, 48, 256>}, {pipeline_mode = #tpu.pipeline_mode<synchronous>, transform_indices = @transform_2, window_bounds = array<i64: 256, 256>}, {transform_indices = @transform_3, window_bounds = array<i64: 1, 1, 128>}, {transform_indices = @transform_4, window_bounds = array<i64: 1, 1, 128>}]} {
    %c0_i32 = arith.constant 0 : i32
    %0 = arith.cmpi eq, %arg1, %c0_i32 : i32
    %1 = arith.extui %0 : i1 to i32
    %c0_i32_0 = arith.constant 0 : i32
    %2 = arith.cmpi ne, %1, %c0_i32_0 : i32
    scf.if %2 {
      %cst_21 = arith.constant 0.000000e+00 : f32
      %43 = vector.broadcast %cst_21 : f32 to vector<48x128xf32>
      %c0_22 = arith.constant 0 : index
      %c0_23 = arith.constant 0 : index
      %44 = vector.load %arg7[%c0_22, %c0_23] : memref<48x128xf32, #tpu.memory_space<vmem>>, vector<48x128xf32>
      tpu.vector_store %arg7[%c0_22, %c0_23], %43 {strides = array<i32>} : memref<48x128xf32, #tpu.memory_space<vmem>>, vector<48x128xf32>,
      %cst_24 = arith.constant 0.000000e+00 : f32
      %45 = vector.broadcast %cst_24 : f32 to vector<48x128xf32>
      %c0_25 = arith.constant 0 : index
      %c0_26 = arith.constant 0 : index
      %46 = vector.load %arg8[%c0_25, %c0_26] : memref<48x128xf32, #tpu.memory_space<vmem>>, vector<48x128xf32>
      tpu.vector_store %arg8[%c0_25, %c0_26], %45 {strides = array<i32>} : memref<48x128xf32, #tpu.memory_space<vmem>>, vector<48x128xf32>,
    } else {
    }
    %c0 = arith.constant 0 : index
    %c0_1 = arith.constant 0 : index
    %c0_2 = arith.constant 0 : index
    %3 = vector.load %arg2[%c0, %c0_1, %c0_2] : memref<1x48x256xbf16, #tpu.memory_space<vmem>>, vector<1x48x256xbf16>
    %4 = vector.shape_cast %3 : vector<1x48x256xbf16> to vector<48x256xbf16>
    %c0_3 = arith.constant 0 : index
    %c0_4 = arith.constant 0 : index
    %c0_5 = arith.constant 0 : index
    %5 = vector.load %arg3[%c0_3, %c0_4, %c0_5] : memref<1x48x256xbf16, #tpu.memory_space<vmem>>, vector<1x48x256xbf16>
    %6 = vector.shape_cast %5 : vector<1x48x256xbf16> to vector<48x256xbf16>
    %c0_6 = arith.constant 0 : index
    %c0_7 = arith.constant 0 : index
    %7 = vector.load %arg4[%c0_6, %c0_7] : memref<256x256xbf16, #tpu.memory_space<vmem>>, vector<256x256xbf16>
    %cst = arith.constant dense<0.000000e+00> : vector<48x256xf32>
    %8 = tpu.matmul %4, %7, %cst {dimension_numbers = #tpu.dot_dimension_numbers<[1], [0], [0], [1], [0, 0, 1, 1], [], []>} : vector<48x256xbf16>, vector<256x256xbf16>, vector<48x256xf32> -> vector<48x256xf32>
    %cst_8 = arith.constant dense<0.000000e+00> : vector<48x256xf32>
    %9 = tpu.matmul %6, %7, %cst_8 {dimension_numbers = #tpu.dot_dimension_numbers<[1], [0], [0], [1], [0, 0, 1, 1], [], []>} : vector<48x256xbf16>, vector<256x256xbf16>, vector<48x256xf32> -> vector<48x256xf32>
    %10 = vector.extract_strided_slice %8 {offsets = [0, 0], sizes = [48, 128], strides = [1, 1]} : vector<48x256xf32> to vector<48x128xf32>
    %11 = vector.extract_strided_slice %8 {offsets = [0, 128], sizes = [48, 128], strides = [1, 1]} : vector<48x256xf32> to vector<48x128xf32>
    %12 = vector.extract_strided_slice %9 {offsets = [0, 0], sizes = [48, 128], strides = [1, 1]} : vector<48x256xf32> to vector<48x128xf32>
    %13 = vector.extract_strided_slice %9 {offsets = [0, 128], sizes = [48, 128], strides = [1, 1]} : vector<48x256xf32> to vector<48x128xf32>
    %14 = arith.mulf %10, %10 : vector<48x128xf32>
    %15 = arith.mulf %11, %11 : vector<48x128xf32>
    %16 = arith.addf %14, %15 : vector<48x128xf32>
    %17 = arith.mulf %12, %12 : vector<48x128xf32>
    %18 = arith.mulf %13, %13 : vector<48x128xf32>
    %19 = arith.addf %17, %18 : vector<48x128xf32>
    %c0_9 = arith.constant 0 : index
    %c0_10 = arith.constant 0 : index
    %20 = vector.load %arg7[%c0_9, %c0_10] : memref<48x128xf32, #tpu.memory_space<vmem>>, vector<48x128xf32>
    %21 = math.sqrt %16 : vector<48x128xf32>
    %22 = math.sqrt %19 : vector<48x128xf32>
    %23 = arith.subf %21, %22 : vector<48x128xf32>
    %24 = math.absf %23 : vector<48x128xf32>
    %25 = arith.addf %20, %24 : vector<48x128xf32>
    %c0_11 = arith.constant 0 : index
    %c0_12 = arith.constant 0 : index
    %26 = vector.load %arg7[%c0_11, %c0_12] : memref<48x128xf32, #tpu.memory_space<vmem>>, vector<48x128xf32>
    tpu.vector_store %arg7[%c0_11, %c0_12], %25 {strides = array<i32>} : memref<48x128xf32, #tpu.memory_space<vmem>>, vector<48x128xf32>,
    %27 = arith.mulf %10, %12 : vector<48x128xf32>
    %28 = arith.mulf %11, %13 : vector<48x128xf32>
    %29 = arith.addf %27, %28 : vector<48x128xf32>
    %30 = arith.mulf %16, %19 : vector<48x128xf32>
    %c0_13 = arith.constant 0 : index
    %c0_14 = arith.constant 0 : index
    %31 = vector.load %arg8[%c0_13, %c0_14] : memref<48x128xf32, #tpu.memory_space<vmem>>, vector<48x128xf32>
    %cst_15 = arith.constant 0.000000e+00 : f32
    %32 = vector.broadcast %cst_15 : f32 to vector<48x128xf32>
    %33 = arith.cmpf ogt, %30, %32 : vector<48x128xf32>
    %cst_16 = arith.constant 1.000000e+00 : f32
    %34 = vector.broadcast %cst_16 : f32 to vector<48x128xf32>
    %35 = arith.select %33, %30, %34 : vector<48x128xi1>, vector<48x128xf32>
    %36 = math.rsqrt %35 : vector<48x128xf32>
    %37 = arith.mulf %29, %36 : vector<48x128xf32>
    %38 = arith.addf %31, %37 : vector<48x128xf32>
    %c0_17 = arith.constant 0 : index
    %c0_18 = arith.constant 0 : index
    %39 = vector.load %arg8[%c0_17, %c0_18] : memref<48x128xf32, #tpu.memory_space<vmem>>, vector<48x128xf32>
    tpu.vector_store %arg8[%c0_17, %c0_18], %38 {strides = array<i32>} : memref<48x128xf32, #tpu.memory_space<vmem>>, vector<48x128xf32>,
    %c0_i32_19 = arith.constant 0 : i32
    %40 = arith.cmpi eq, %arg1, %c0_i32_19 : i32
    %41 = arith.extui %40 : i1 to i32
    %c0_i32_20 = arith.constant 0 : i32
    %42 = arith.cmpi ne, %41, %c0_i32_20 : i32
    scf.if %42 {
      %c0_21 = arith.constant 0 : index
      %c0_22 = arith.constant 0 : index
      %43 = vector.load %arg7[%c0_21, %c0_22] : memref<48x128xf32, #tpu.memory_space<vmem>>, vector<48x128xf32>
      %cst_23 = arith.constant dense<0.000000e+00> : vector<128xf32>
      %44 = vector.multi_reduction <add>, %43, %cst_23 [0] : vector<48x128xf32> to vector<128xf32>
      %45 = vector.shape_cast %44 : vector<128xf32> to vector<1x128xf32>
      %c0_24 = arith.constant 0 : index
      %c0_25 = arith.constant 0 : index
      %c0_26 = arith.constant 0 : index
      %46 = vector.load %arg5[%c0_24, %c0_25, %c0_26] : memref<1x1x128xf32, #tpu.memory_space<vmem>>, vector<1x1x128xf32>
      %47 = vector.shape_cast %46 : vector<1x1x128xf32> to vector<1x128xf32>
      %48 = vector.shape_cast %45 : vector<1x128xf32> to vector<1x1x128xf32>
      tpu.vector_store %arg5[%c0_24, %c0_25, %c0_26], %48 {strides = array<i32>} : memref<1x1x128xf32, #tpu.memory_space<vmem>>, vector<1x1x128xf32>,
      %c0_27 = arith.constant 0 : index
      %c0_28 = arith.constant 0 : index
      %49 = vector.load %arg8[%c0_27, %c0_28] : memref<48x128xf32, #tpu.memory_space<vmem>>, vector<48x128xf32>
      %cst_29 = arith.constant dense<0.000000e+00> : vector<128xf32>
      %50 = vector.multi_reduction <add>, %49, %cst_29 [0] : vector<48x128xf32> to vector<128xf32>
      %51 = vector.shape_cast %50 : vector<128xf32> to vector<1x128xf32>
      %c0_30 = arith.constant 0 : index
      %c0_31 = arith.constant 0 : index
      %c0_32 = arith.constant 0 : index
      %52 = vector.load %arg6[%c0_30, %c0_31, %c0_32] : memref<1x1x128xf32, #tpu.memory_space<vmem>>, vector<1x1x128xf32>
      %53 = vector.shape_cast %52 : vector<1x1x128xf32> to vector<1x128xf32>
      %54 = vector.shape_cast %51 : vector<1x128xf32> to vector<1x1x128xf32>
      tpu.vector_store %arg6[%c0_30, %c0_31, %c0_32], %54 {strides = array<i32>} : memref<1x1x128xf32, #tpu.memory_space<vmem>>, vector<1x1x128xf32>,
    } else {
    }
    return
  }
  func.func @transform_0(%arg0: i32, %arg1: i32) -> (i32, i32, i32) {
    %c0_i32 = arith.constant 0 : i32
    %c0_i32_0 = arith.constant 0 : i32
    return %arg0, %arg1, %c0_i32 : i32, i32, i32
  }
  func.func @transform_1(%arg0: i32, %arg1: i32) -> (i32, i32, i32) {
    %c0_i32 = arith.constant 0 : i32
    %c0_i32_0 = arith.constant 0 : i32
    return %arg0, %arg1, %c0_i32 : i32, i32, i32
  }
  func.func @transform_2(%arg0: i32, %arg1: i32) -> (i32, i32) {
    %c0_i32 = arith.constant 0 : i32
    %c0_i32_0 = arith.constant 0 : i32
    %c0_i32_1 = arith.constant 0 : i32
    return %c0_i32, %c0_i32_0 : i32, i32
  }
  func.func @transform_3(%arg0: i32, %arg1: i32) -> (i32, i32, i32) {
    %c0_i32 = arith.constant 0 : i32
    %c0_i32_0 = arith.constant 0 : i32
    %c0_i32_1 = arith.constant 0 : i32
    return %arg0, %c0_i32, %c0_i32_0 : i32, i32, i32
  }
  func.func @transform_4(%arg0: i32, %arg1: i32) -> (i32, i32, i32) {
    %c0_i32 = arith.constant 0 : i32
    %c0_i32_0 = arith.constant 0 : i32
    %c0_i32_1 = arith.constant 0 : i32
    return %arg0, %c0_i32, %c0_i32_0 : i32, i32, i32
  }
}

</mosaic_0001>

<llo_original>
// kernel: tpu_custom_call.1
$region0: #{tpu_custom_call.1}
  #allocation0 [shape = 'u32[]', space=smem, size = 0x4, offset = 0x4, fixed_abs, tag = 'smem constant byte address 0x4 - core index']
  #allocation1 [shape = 'u32[144,128]{1,0:T(1,128)}', space=vmem, size = 0x12000, scoped, tag = 'internal scratch']
  #allocation2 [shape = 'f32[48,128]{1,0:T(8,128)}', space=vmem, size = 0x6000, scoped, tag = 'scratch operand']
  #allocation3 [shape = 'f32[48,128]{1,0:T(8,128)}', space=vmem, size = 0x6000, scoped, tag = 'scratch operand']
  %s0 = inlined_call_operand.hbm [shape: bf16[2,48,256], index: 0, kind: input, shape index: {}]
  %s1 = inlined_call_operand.hbm [shape: bf16[2,48,256], index: 1, kind: input, shape index: {}]
  %s2 = inlined_call_operand.hbm [shape: bf16[256,256], index: 2, kind: input, shape index: {}]
  %s3 = inlined_call_operand.hbm [shape: f32[2,1,128], index: 3, kind: output, shape index: {0}]
  %s4 = inlined_call_operand.hbm [shape: f32[2,1,128], index: 4, kind: output, shape index: {1}]
  %5 = xla_tuple %s3, %s4
  %s6 = sld [smem:[#allocation0]]
  $region73: #{tpu_custom_call.1} parent=0
    _
  %s8 = ssub.s32 1, %s6
  %s9 = scalar_select 0, %s8, %s6
  $region1: #{tpu_custom_call.1} parent=0
    #allocation4 [shape = 'u8[49152]{0}', space=vmem, size = 0xc000, scoped, tag = 'input window, operand 0']
    #allocation5 [shape = 's32[2]{0}', space=sflag, size = 0x8, scoped, tag = 'scoped memory for tpu_custom_call.1']
    #allocation6 [shape = 's32[2]{0}', space=sflag, size = 0x8, scoped, tag = 'scoped memory for tpu_custom_call.1']
    #allocation7 [shape = 'u8[49152]{0}', space=vmem, size = 0xc000, scoped, tag = 'input window, operand 1']
    #allocation8 [shape = 's32[2]{0}', space=sflag, size = 0x8, scoped, tag = 'scoped memory for tpu_custom_call.1']
    #allocation9 [shape = 'u8[131072]{0}', space=vmem, size = 0x20000, scoped, tag = 'input window, operand 2, single buffered']
    #allocation10 [shape = 'u8[1024]{0}', space=vmem, size = 0x400, scoped, tag = 'output window, operand 0']
    #allocation11 [shape = 'u8[1024]{0}', space=vmem, size = 0x400, scoped, tag = 'output window, operand 1']
    #allocation12 [shape = 's32[2]{0}', space=sflag, size = 0x8, scoped, tag = 'scoped memory for tpu_custom_call.1']
    %10 = vsyncpa [#allocation5], 0
    %s11 = scalar_lea.sflag [#allocation5], 1
    %12 = vsyncpa %s11, 0
    %13 = vsyncpa [#allocation8], 0
    %s14 = scalar_lea.sflag [#allocation8], 1
    %15 = vsyncpa %s14, 0
    %16 = vsyncpa [#allocation6], 0
    %s17 = scalar_lea.sflag [#allocation6], 1
    %18 = vsyncpa %s17, 0
    %19 = vsyncpa [#allocation12], 0
    %s20 = scalar_lea.sflag [#allocation12], 1
    %21 = vsyncpa %s20, 0
    loop: start=0, step=1, limit=4
    $region2: #{tpu_custom_call.1} parent=1 // loop_pre_header
      _
    $region3: #{tpu_custom_call.1} parent=1 // loop_header
      %s23 = sphi 0, %s27
      %p24 = scmp.ge.s32.totalorder %s23, 4
      %s30 = sphi 0, %s42
      %s31 = sphi 0, %s38
      %s32 = sphi 0, %s30
      %s33 = sphi 0, %s31
      %s34 = sphi 0, %s32
      %s35 = sphi 0, %s33
      %s47 = sphi 0, %s49
      %s50 = sphi 0, %s47
      %s51 = sphi 0, %s50
      %s67 = sphi 0, %s51
      %s75 = sphi 0, %s77
      %s78 = sphi 0, %s75
      %s79 = sphi 0, %s78
      %s95 = sphi 0, %s79
      %s99 = sphi 0, %s99
      %s101 = sphi 0, %s99
      %s102 = sphi 0, %s101
      %s116 = sphi 0, %s102
      %s122 = sphi 0, %s124
      %s125 = sphi 0, %s122
      %s126 = sphi 0, %s125
      %s142 = sphi 0, %s126
      %s148 = sphi 0, %s150
      %s151 = sphi 0, %s148
      %s152 = sphi 0, %s151
      %s168 = sphi 0, %s152
    $region4: #{tpu_custom_call.1} parent=1 // loop_header_branch
      %26 = sbr.rel (%p24) target = $region8
    $region5: #{tpu_custom_call.1} parent=1 // loop_body
      %s28 = ssub.s32 %s23, 1
      %s29 = ssub.s32 %s23, 2
      %s36 = sadd.s32 1, %s31
      %p37 = scmp.ge.s32.totalorder %s36, 1
      %s38 = scalar_select %p37, 0, %s36
      %s39 = sadd.s32 1, %s30
      %s40 = scalar_select %p37, %s39, %s30
      %p41 = scmp.ge.s32.totalorder %s40, 2
      %s42 = scalar_select %p41, 0, %s40
      %s43 = ssub.s32 %s30, %s42
      %s44 = ssub.s32 %s31, %s38
      %s45 = sor.u32 %s43, %s44
      %p46 = scmp.eq.s32.totalorder %s45, 0
      %s48 = sadd.s32 %s47, 1
      %s49 = scalar_select %p46, %s47, %s48
      %p52 = pneg %p46
      %p53 = scmp.eq.s32.totalorder %s23, 1
      %p54 = por %p52, %p53
      %p55 = scmp.ne.s32.totalorder %s47, %s50
      %p56 = scmp.eq.s32.totalorder %s23, 0
      %p57 = por %p55, %p56
      %p58 = scmp.ne.s32.totalorder %s47, %s50
      %p59 = scmp.eq.s32.totalorder %s28, 1
      %p60 = por %p58, %p59
      %p61 = scmp.ne.s32.totalorder %s50, %s51
      %p62 = scmp.eq.s32.totalorder %s28, 0
      %p63 = por %p61, %p62
      %p64 = scmp.ne.s32.totalorder %s50, %s51
      %p65 = scmp.eq.s32.totalorder %s29, 1
      %p66 = por %p64, %p65
      %p68 = scmp.ne.s32.totalorder %s51, %s67
      %p69 = scmp.eq.s32.totalorder %s29, 0
      %p70 = por %p68, %p69
      %s71 = ssub.s32 %s30, %s42
      %s72 = ssub.s32 %s31, %s38
      %s73 = sor.u32 %s71, %s72
      %p74 = scmp.eq.s32.totalorder %s73, 0
      %s76 = sadd.s32 %s75, 1
      %s77 = scalar_select %p74, %s75, %s76
      %p80 = pneg %p74
      %p81 = scmp.eq.s32.totalorder %s23, 1
      %p82 = por %p80, %p81
      %p83 = scmp.ne.s32.totalorder %s75, %s78
      %p84 = scmp.eq.s32.totalorder %s23, 0
      %p85 = por %p83, %p84
      %p86 = scmp.ne.s32.totalorder %s75, %s78
      %p87 = scmp.eq.s32.totalorder %s28, 1
      %p88 = por %p86, %p87
      %p89 = scmp.ne.s32.totalorder %s78, %s79
      %p90 = scmp.eq.s32.totalorder %s28, 0
      %p91 = por %p89, %p90
      %p92 = scmp.ne.s32.totalorder %s78, %s79
      %p93 = scmp.eq.s32.totalorder %s29, 1
      %p94 = por %p92, %p93
      %p96 = scmp.ne.s32.totalorder %s79, %s95
      %p97 = scmp.eq.s32.totalorder %s29, 0
      %p98 = por %p96, %p97
      %s100 = sadd.s32 %s99, 1
      %p103 = scmp.eq.s32.totalorder %s23, 1
      %p104 = scmp.ne.s32.totalorder %s99, %s101
      %p105 = scmp.eq.s32.totalorder %s23, 0
      %p106 = por %p104, %p105
      %p107 = scmp.ne.s32.totalorder %s99, %s101
      %p108 = scmp.eq.s32.totalorder %s28, 1
      %p109 = por %p107, %p108
      %p110 = scmp.ne.s32.totalorder %s101, %s102
      %p111 = scmp.eq.s32.totalorder %s28, 0
      %p112 = por %p110, %p111
      %p113 = scmp.ne.s32.totalorder %s101, %s102
      %p114 = scmp.eq.s32.totalorder %s29, 1
      %p115 = por %p113, %p114
      %p117 = scmp.ne.s32.totalorder %s102, %s116
      %p118 = scmp.eq.s32.totalorder %s29, 0
      %p119 = por %p117, %p118
      %s120 = ssub.s32 %s30, %s42
      %p121 = scmp.eq.s32.totalorder %s120, 0
      %s123 = sadd.s32 %s122, 1
      %s124 = scalar_select %p121, %s122, %s123
      %p127 = pneg %p121
      %p128 = scmp.eq.s32.totalorder %s23, 1
      %p129 = por %p127, %p128
      %p130 = scmp.ne.s32.totalorder %s122, %s125
      %p131 = scmp.eq.s32.totalorder %s23, 0
      %p132 = por %p130, %p131
      %p133 = scmp.ne.s32.totalorder %s122, %s125
      %p134 = scmp.eq.s32.totalorder %s28, 1
      %p135 = por %p133, %p134
      %p136 = scmp.ne.s32.totalorder %s125, %s126
      %p137 = scmp.eq.s32.totalorder %s28, 0
      %p138 = por %p136, %p137
      %p139 = scmp.ne.s32.totalorder %s125, %s126
      %p140 = scmp.eq.s32.totalorder %s29, 1
      %p141 = por %p139, %p140
      %p143 = scmp.ne.s32.totalorder %s126, %s142
      %p144 = scmp.eq.s32.totalorder %s29, 0
      %p145 = por %p143, %p144
      %s146 = ssub.s32 %s30, %s42
      %p147 = scmp.eq.s32.totalorder %s146, 0
      %s149 = sadd.s32 %s148, 1
      %s150 = scalar_select %p147, %s148, %s149
      %p153 = pneg %p147
      %p154 = scmp.eq.s32.totalorder %s23, 1
      %p155 = por %p153, %p154
      %p156 = scmp.ne.s32.totalorder %s148, %s151
      %p157 = scmp.eq.s32.totalorder %s23, 0
      %p158 = por %p156, %p157
      %p159 = scmp.ne.s32.totalorder %s148, %s151
      %p160 = scmp.eq.s32.totalorder %s28, 1
      %p161 = por %p159, %p160
      %p162 = scmp.ne.s32.totalorder %s151, %s152
      %p163 = scmp.eq.s32.totalorder %s28, 0
      %p164 = por %p162, %p163
      %p165 = scmp.ne.s32.totalorder %s151, %s152
      %p166 = scmp.eq.s32.totalorder %s29, 1
      %p167 = por %p165, %p166
      %p169 = scmp.ne.s32.totalorder %s152, %s168
      %p170 = scmp.eq.s32.totalorder %s29, 0
      %p171 = por %p169, %p170
      %p172 = scmp.le.s32.totalorder 1, %s23
      %p173 = scmp.lt.s32.totalorder %s23, 3
      %p174 = pnand %p172, %p173
      %p175 = pneg %p174
      // Predicated region
      $region9: #{tpu_custom_call.1} parent=5 // pred_check
        _
      $region10: #{tpu_custom_call.1} parent=5 // pred_check_branch
        %177 = sbr.rel (%p174) target = $region12
      $region11: #{tpu_custom_call.1} parent=5 // pred_region
        %s178 = ssub.s32 %s23, 1
        // Predicated region
        $region13: #{tpu_custom_call.1} parent=11 // pred_check
          %p179 = pneg %p112
        $region14: #{tpu_custom_call.1} parent=11 // pred_check_branch
          %181 = sbr.rel (%p179) target = $region16
        $region15: #{tpu_custom_call.1} parent=11 // pred_region
          %s183 = ssub.s32 4096, 4096
          %184 = vsyncadd [#allocation8], %s183
          %s185 = sshll.u32 [#allocation9], 4
          %s186 = int_to_ptr.vmem [resolvable:$true] %s185
          %191 = dma.hbm_to_vmem [thread:$0]  %s2, 4096, %s186, [#allocation8], 128, 128, 8
        $region16: #{tpu_custom_call.1} parent=11 // pred_fallthru
          _
      $region12: #{tpu_custom_call.1} parent=5 // pred_fallthru
        _
      %p192 = scmp.lt.s32.totalorder %s23, 2
      // Predicated region
      $region17: #{tpu_custom_call.1} parent=5 // pred_check
        %p193 = pneg %p192
      $region18: #{tpu_custom_call.1} parent=5 // pred_check_branch
        %195 = sbr.rel (%p193) target = $region20
      $region19: #{tpu_custom_call.1} parent=5 // pred_region
        // Predicated region
        $region21: #{tpu_custom_call.1} parent=19 // pred_check
          %p196 = pneg %p57
        $region22: #{tpu_custom_call.1} parent=19 // pred_check_branch
          %198 = sbr.rel (%p196) target = $region24
        $region23: #{tpu_custom_call.1} parent=19 // pred_region
          %s199 = sand.u32 %s47, 1
          %s200 = scalar_lea.sflag [#allocation5], %s199
          %s201 = sand.u32 %s47, 1
          %s202 = smul.addr %s201, 48
          %s203 = scalar_lea.vmem [#allocation4], %s202
          %s204 = smul.u32 6, %s31
          %s206 = ssub.s32 768, 768
          %207 = vsyncadd %s200, %s206
          %s208 = smul.addr %s204, 2
          %s209 = smul.addr %s30, 12
          %s210 = sadd.s32 %s208, %s209
          %s211 = smul.addr %s210, 64
          %s212 = scalar_lea.hbm %s0, %s211
          %s213 = sshll.u32 %s203, 4
          %s214 = int_to_ptr.vmem [resolvable:$true] %s213
          %219 = dma.hbm_to_vmem [thread:$0]  %s212, 768, %s214, %s200, 128, 128, 8
        $region24: #{tpu_custom_call.1} parent=19 // pred_fallthru
          _
        // Predicated region
        $region25: #{tpu_custom_call.1} parent=19 // pred_check
          %p220 = pneg %p85
        $region26: #{tpu_custom_call.1} parent=19 // pred_check_branch
          %222 = sbr.rel (%p220) target = $region28
        $region27: #{tpu_custom_call.1} parent=19 // pred_region
          %s223 = sand.u32 %s23, 1
          %s224 = scalar_lea.sflag [#allocation8], %s223
          %s225 = sand.u32 %s75, 1
          %s226 = smul.addr %s225, 48
          %s227 = scalar_lea.vmem [#allocation7], %s226
          %s228 = smul.u32 6, %s31
          %s230 = ssub.s32 768, 768
          %231 = vsyncadd %s224, %s230
          %s232 = smul.addr %s228, 2
          %s233 = smul.addr %s30, 12
          %s234 = sadd.s32 %s232, %s233
          %s235 = smul.addr %s234, 64
          %s236 = scalar_lea.hbm %s1, %s235
          %s237 = sshll.u32 %s227, 4
          %s238 = int_to_ptr.vmem [resolvable:$true] %s237
          %243 = dma.hbm_to_vmem [thread:$0]  %s236, 768, %s238, %s224, 128, 128, 8
        $region28: #{tpu_custom_call.1} parent=19 // pred_fallthru
          _
      $region20: #{tpu_custom_call.1} parent=5 // pred_fallthru
        _
      %p244 = scmp.le.s32.totalorder 1, %s23
      %p245 = scmp.lt.s32.totalorder %s23, 3
      %p246 = pnand %p244, %p245
      %p247 = pneg %p246
      // Predicated region
      $region29: #{tpu_custom_call.1} parent=5 // pred_check
        _
      $region30: #{tpu_custom_call.1} parent=5 // pred_check_branch
        %249 = sbr.rel (%p246) target = $region32
      $region31: #{tpu_custom_call.1} parent=5 // pred_region
        %s250 = ssub.s32 %s23, 1
        %s251 = sand.u32 %s50, 1
        %s252 = scalar_lea.sflag [#allocation5], %s251
        %s253 = sand.u32 %s50, 1
        %s254 = smul.addr %s253, 48
        %s255 = scalar_lea.vmem [#allocation4], %s254
        // Predicated region
        $region33: #{tpu_custom_call.1} parent=31 // pred_check
          %p256 = pneg %p63
        $region34: #{tpu_custom_call.1} parent=31 // pred_check_branch
          %258 = sbr.rel (%p256) target = $region36
        $region35: #{tpu_custom_call.1} parent=31 // pred_region
          %259 = dma.done %s252, 768
        $region36: #{tpu_custom_call.1} parent=31 // pred_fallthru
          _
        %s260 = sand.u32 %s28, 1
        %s261 = scalar_lea.sflag [#allocation8], %s260
        %s262 = sand.u32 %s78, 1
        %s263 = smul.addr %s262, 48
        %s264 = scalar_lea.vmem [#allocation7], %s263
        // Predicated region
        $region37: #{tpu_custom_call.1} parent=31 // pred_check
          %p265 = pneg %p91
        $region38: #{tpu_custom_call.1} parent=31 // pred_check_branch
          %267 = sbr.rel (%p265) target = $region40
        $region39: #{tpu_custom_call.1} parent=31 // pred_region
          %268 = dma.done %s261, 768
        $region40: #{tpu_custom_call.1} parent=31 // pred_fallthru
          _
        // Predicated region
        $region41: #{tpu_custom_call.1} parent=31 // pred_check
          %p269 = pneg %p112
        $region42: #{tpu_custom_call.1} parent=31 // pred_check_branch
          %271 = sbr.rel (%p269) target = $region44
        $region43: #{tpu_custom_call.1} parent=31 // pred_region
          %272 = dma.done [#allocation8], 4096
        $region44: #{tpu_custom_call.1} parent=31 // pred_fallthru
          _
        %s273 = sand.u32 %s50, 1
        %s274 = scalar_lea.sflag [#allocation5], %s273
        %s275 = sand.u32 %s50, 1
        %s276 = smul.addr %s275, 48
        %s277 = scalar_lea.vmem [#allocation4], %s276
        %p278 = pneg %p63
        %p279 = pneg %p60
        %s280 = sand.u32 %s28, 1
        %s281 = scalar_lea.sflag [#allocation8], %s280
        %s282 = sand.u32 %s78, 1
        %s283 = smul.addr %s282, 48
        %s284 = scalar_lea.vmem [#allocation7], %s283
        %p285 = pneg %p91
        %p286 = pneg %p88
        %p287 = pneg %p112
        %p288 = pneg %p109
        %p289 = pneg %p138
        %p290 = pneg %p135
        %s291 = sand.u32 %s125, 1
        %s292 = scalar_lea.sflag [#allocation6], %s291
        %s293 = sand.u32 %s125, 1
        %s294 = scalar_lea.vmem [#allocation10], %s293
        %p295 = pneg %p164
        %p296 = pneg %p161
        %s297 = sand.u32 %s151, 1
        %s298 = scalar_lea.sflag [#allocation12], %s297
        %s299 = sand.u32 %s151, 1
        %s300 = scalar_lea.vmem [#allocation11], %s299
        %s301 = smul.u32 6, %s33
        %s302 = smul.u32 6, %s33
        %p303 = scmp.eq.s32.totalorder %s33, 0
        // Predicated region
        $region45: #{tpu_custom_call.1} parent=31 // pred_check
          %p304 = pneg %p303
        $region46: #{tpu_custom_call.1} parent=31 // pred_check_branch
          %306 = sbr.rel (%p304) target = $region48
        $region47: #{tpu_custom_call.1} parent=31 // pred_region
          %307 = vst [vmem:[#allocation2] sm:$0xff] 0.0
          %308 = vst [vmem:[#allocation2 + $0x8] sm:$0xff] 0.0
          %309 = vst [vmem:[#allocation2 + $0x10] sm:$0xff] 0.0
          %310 = vst [vmem:[#allocation2 + $0x18] sm:$0xff] 0.0
          %311 = vst [vmem:[#allocation2 + $0x20] sm:$0xff] 0.0
          %312 = vst [vmem:[#allocation2 + $0x28] sm:$0xff] 0.0
          %313 = vst [vmem:[#allocation3] sm:$0xff] 0.0
          %314 = vst [vmem:[#allocation3 + $0x8] sm:$0xff] 0.0
          %315 = vst [vmem:[#allocation3 + $0x10] sm:$0xff] 0.0
          %316 = vst [vmem:[#allocation3 + $0x18] sm:$0xff] 0.0
          %317 = vst [vmem:[#allocation3 + $0x20] sm:$0xff] 0.0
          %318 = vst [vmem:[#allocation3 + $0x28] sm:$0xff] 0.0
        $region48: #{tpu_custom_call.1} parent=31 // pred_fallthru
          _
        %v319 = vld [vmem:[%s255] sm:$0xff]
        %v320 = vld [vmem:[%s255 + $0x8] sm:$0xff]
        %v321 = vld [vmem:[%s255 + $0x10] sm:$0xff]
        %v322 = vld [vmem:[%s255 + $0x18] sm:$0xff]
        %v323 = vld [vmem:[%s255 + $0x20] sm:$0xff]
        %v324 = vld [vmem:[%s255 + $0x28] sm:$0xff]
        %v325 = vld [vmem:[%s264] sm:$0xff]
        %v326 = vld [vmem:[%s264 + $0x8] sm:$0xff]
        %v327 = vld [vmem:[%s264 + $0x10] sm:$0xff]
        %v328 = vld [vmem:[%s264 + $0x18] sm:$0xff]
        %v329 = vld [vmem:[%s264 + $0x20] sm:$0xff]
        %v330 = vld [vmem:[%s264 + $0x28] sm:$0xff]
        %v331 = vld [vmem:[#allocation9] sm:$0xff]
        %v332 = vld [vmem:[#allocation9 + $0x8] sm:$0xff]
        %v333 = vld [vmem:[#allocation9 + $0x10] sm:$0xff]
        %v334 = vld [vmem:[#allocation9 + $0x18] sm:$0xff]
        %v335 = vld [vmem:[#allocation9 + $0x20] sm:$0xff]
        %v336 = vld [vmem:[#allocation9 + $0x28] sm:$0xff]
        %v337 = vld [vmem:[#allocation9 + $0x30] sm:$0xff]
        %v338 = vld [vmem:[#allocation9 + $0x38] sm:$0xff]
        %v339 = vld [vmem:[#allocation9 + $0x40] sm:$0xff]
        %v340 = vld [vmem:[#allocation9 + $0x48] sm:$0xff]
        %v341 = vld [vmem:[#allocation9 + $0x50] sm:$0xff]
        %v342 = vld [vmem:[#allocation9 + $0x58] sm:$0xff]
        %v343 = vld [vmem:[#allocation9 + $0x60] sm:$0xff]
        %v344 = vld [vmem:[#allocation9 + $0x68] sm:$0xff]
        %v345 = vld [vmem:[#allocation9 + $0x70] sm:$0xff]
        %v346 = vld [vmem:[#allocation9 + $0x78] sm:$0xff]
        %v347 = vld [vmem:[#allocation9 + $0x80] sm:$0xff]
        %v348 = vld [vmem:[#allocation9 + $0x88] sm:$0xff]
        %v349 = vld [vmem:[#allocation9 + $0x90] sm:$0xff]
        %v350 = vld [vmem:[#allocation9 + $0x98] sm:$0xff]
        %v351 = vld [vmem:[#allocation9 + $0xa0] sm:$0xff]
        %v352 = vld [vmem:[#allocation9 + $0xa8] sm:$0xff]
        %v353 = vld [vmem:[#allocation9 + $0xb0] sm:$0xff]
        %v354 = vld [vmem:[#allocation9 + $0xb8] sm:$0xff]
        %v355 = vld [vmem:[#allocation9 + $0xc0] sm:$0xff]
        %v356 = vld [vmem:[#allocation9 + $0xc8] sm:$0xff]
        %v357 = vld [vmem:[#allocation9 + $0xd0] sm:$0xff]
        %v358 = vld [vmem:[#allocation9 + $0xd8] sm:$0xff]
        %v359 = vld [vmem:[#allocation9 + $0xe0] sm:$0xff]
        %v360 = vld [vmem:[#allocation9 + $0xe8] sm:$0xff]
        %v361 = vld [vmem:[#allocation9 + $0xf0] sm:$0xff]
        %v362 = vld [vmem:[#allocation9 + $0xf8] sm:$0xff]
        %v369 = vunpack.c.l.b16 %v319
        %v370 = vunpack.c.h.b16 %v319
        %v371 = vunpack.c.l.b16 %v320
        %v372 = vunpack.c.h.b16 %v320
        %v373 = vunpack.c.l.b16 %v321
        %v374 = vunpack.c.h.b16 %v321
        %v375 = vunpack.c.l.b16 %v322
        %v376 = vunpack.c.h.b16 %v322
        %v377 = vunpack.c.l.b16 %v323
        %v378 = vunpack.c.h.b16 %v323
        %v379 = vunpack.c.l.b16 %v324
        %v380 = vunpack.c.h.b16 %v324
        %v381 = vpack.c.b16 %v371, %v369
        %v382 = vpack.c.b16 %v372, %v370
        %v383 = vpack.c.b16 %v375, %v373
        %v384 = vpack.c.b16 %v376, %v374
        %v385 = vpack.c.b16 %v379, %v377
        %v386 = vpack.c.b16 %v380, %v378
        %v425 = vunpack.c.l.b16 %v331
        %v426 = vunpack.c.h.b16 %v331
        %v427 = vunpack.c.l.b16 %v332
        %v428 = vunpack.c.h.b16 %v332
        %v429 = vunpack.c.l.b16 %v333
        %v430 = vunpack.c.h.b16 %v333
        %v431 = vunpack.c.l.b16 %v334
        %v432 = vunpack.c.h.b16 %v334
        %v433 = vunpack.c.l.b16 %v335
        %v434 = vunpack.c.h.b16 %v335
        %v435 = vunpack.c.l.b16 %v336
        %v436 = vunpack.c.h.b16 %v336
        %v437 = vunpack.c.l.b16 %v337
        %v438 = vunpack.c.h.b16 %v337
        %v439 = vunpack.c.l.b16 %v338
        %v440 = vunpack.c.h.b16 %v338
        %v441 = vunpack.c.l.b16 %v339
        %v442 = vunpack.c.h.b16 %v339
        %v443 = vunpack.c.l.b16 %v340
        %v444 = vunpack.c.h.b16 %v340
        %v445 = vunpack.c.l.b16 %v341
        %v446 = vunpack.c.h.b16 %v341
        %v447 = vunpack.c.l.b16 %v342
        %v448 = vunpack.c.h.b16 %v342
        %v449 = vunpack.c.l.b16 %v343
        %v450 = vunpack.c.h.b16 %v343
        %v451 = vunpack.c.l.b16 %v344
        %v452 = vunpack.c.h.b16 %v344
        %v453 = vunpack.c.l.b16 %v345
        %v454 = vunpack.c.h.b16 %v345
        %v455 = vunpack.c.l.b16 %v346
        %v456 = vunpack.c.h.b16 %v346
        %v457 = vunpack.c.l.b16 %v347
        %v458 = vunpack.c.h.b16 %v347
        %v459 = vunpack.c.l.b16 %v348
        %v460 = vunpack.c.h.b16 %v348
        %v461 = vunpack.c.l.b16 %v349
        %v462 = vunpack.c.h.b16 %v349
        %v463 = vunpack.c.l.b16 %v350
        %v464 = vunpack.c.h.b16 %v350
        %v465 = vunpack.c.l.b16 %v351
        %v466 = vunpack.c.h.b16 %v351
        %v467 = vunpack.c.l.b16 %v352
        %v468 = vunpack.c.h.b16 %v352
        %v469 = vunpack.c.l.b16 %v353
        %v470 = vunpack.c.h.b16 %v353
        %v471 = vunpack.c.l.b16 %v354
        %v472 = vunpack.c.h.b16 %v354
        %v473 = vunpack.c.l.b16 %v355
        %v474 = vunpack.c.h.b16 %v355
        %v475 = vunpack.c.l.b16 %v356
        %v476 = vunpack.c.h.b16 %v356
        %v477 = vunpack.c.l.b16 %v357
        %v478 = vunpack.c.h.b16 %v357
        %v479 = vunpack.c.l.b16 %v358
        %v480 = vunpack.c.h.b16 %v358
        %v481 = vunpack.c.l.b16 %v359
        %v482 = vunpack.c.h.b16 %v359
        %v483 = vunpack.c.l.b16 %v360
        %v484 = vunpack.c.h.b16 %v360
        %v485 = vunpack.c.l.b16 %v361
        %v486 = vunpack.c.h.b16 %v361
        %v487 = vunpack.c.l.b16 %v362
        %v488 = vunpack.c.h.b16 %v362
        %v489 = vpack.c.b16 %v427, %v425
        %v490 = vpack.c.b16 %v428, %v426
        %v491 = vpack.c.b16 %v431, %v429
        %v492 = vpack.c.b16 %v432, %v430
        %v493 = vpack.c.b16 %v435, %v433
        %v494 = vpack.c.b16 %v436, %v434
        %v495 = vpack.c.b16 %v439, %v437
        %v496 = vpack.c.b16 %v440, %v438
        %v497 = vpack.c.b16 %v443, %v441
        %v498 = vpack.c.b16 %v444, %v442
        %v499 = vpack.c.b16 %v447, %v445
        %v500 = vpack.c.b16 %v448, %v446
        %v501 = vpack.c.b16 %v451, %v449
        %v502 = vpack.c.b16 %v452, %v450
        %v503 = vpack.c.b16 %v455, %v453
        %v504 = vpack.c.b16 %v456, %v454
        %v505 = vpack.c.b16 %v459, %v457
        %v506 = vpack.c.b16 %v460, %v458
        %v507 = vpack.c.b16 %v463, %v461
        %v508 = vpack.c.b16 %v464, %v462
        %v509 = vpack.c.b16 %v467, %v465
        %v510 = vpack.c.b16 %v468, %v466
        %v511 = vpack.c.b16 %v471, %v469
        %v512 = vpack.c.b16 %v472, %v470
        %v513 = vpack.c.b16 %v475, %v473
        %v514 = vpack.c.b16 %v476, %v474
        %v515 = vpack.c.b16 %v479, %v477
        %v516 = vpack.c.b16 %v480, %v478
        %v517 = vpack.c.b16 %v483, %v481
        %v518 = vpack.c.b16 %v484, %v482
        %v519 = vpack.c.b16 %v487, %v485
        %v520 = vpack.c.b16 %v488, %v486
        %553 = vmatprep.subr.bf16.mxu0 %v490
        %554 = vmatpush1.bf16.msra.mxu0 %v489
        %555 = vmatprep.subr.bf16.mxu0 %v492
        %556 = vmatpush1.bf16.msra.mxu0 %v491
        %557 = vmatprep.subr.bf16.mxu0 %v494
        %558 = vmatpush1.bf16.msra.mxu0 %v493
        %559 = vmatprep.subr.bf16.mxu0 %v496
        %560 = vmatpush1.bf16.msra.mxu0 %v495
        %561 = vmatprep.subr.bf16.mxu0 %v498
        %562 = vmatpush1.bf16.msra.mxu0 %v497
        %563 = vmatprep.subr.bf16.mxu0 %v500
        %564 = vmatpush1.bf16.msra.mxu0 %v499
        %565 = vmatprep.subr.bf16.mxu0 %v502
        %566 = vmatpush1.bf16.msra.mxu0 %v501
        %567 = vmatprep.subr.bf16.mxu0 %v504
        %568 = vmatpush1.bf16.msra.mxu0 %v503
        %569 = vmatprep.subr.bf16.mxu0 %v506
        %570 = vmatpush1.bf16.msra.mxu0 %v505
        %571 = vmatprep.subr.bf16.mxu0 %v508
        %572 = vmatpush1.bf16.msra.mxu0 %v507
        %573 = vmatprep.subr.bf16.mxu0 %v510
        %574 = vmatpush1.bf16.msra.mxu0 %v509
        %575 = vmatprep.subr.bf16.mxu0 %v512
        %576 = vmatpush1.bf16.msra.mxu0 %v511
        %577 = vmatprep.subr.bf16.mxu0 %v514
        %578 = vmatpush1.bf16.msra.mxu0 %v513
        %579 = vmatprep.subr.bf16.mxu0 %v516
        %580 = vmatpush1.bf16.msra.mxu0 %v515
        %581 = vmatprep.subr.bf16.mxu0 %v518
        %582 = vmatpush1.bf16.msra.mxu0 %v517
        %583 = vmatprep.subr.bf16.mxu0 %v520
        %584 = vmatpush1.bf16.msra.mxu0 %v519
        %585 = vmatprep.mubr.bf16.mxu0 %v382
        %586 = vmatmul.mubr.bf16.gmra.mrb[0].mxu0 %v381
        %v587 = vpop.f32.mrb[0].mxu0
        %v588 = vadd.f32 0.0, %v587
        %v589 = vpop.f32.mrb[0].mxu0
        %v590 = vadd.f32 0.0, %v589
        %v591 = vpop.f32.mrb[0].mxu0
        %v592 = vadd.f32 0.0, %v591
        %v593 = vpop.f32.mrb[0].mxu0
        %v594 = vadd.f32 0.0, %v593
        %595 = vmatprep.mubr.bf16.mxu0 %v384
        %596 = vmatmul.mubr.bf16.gmra.mrb[0].mxu0 %v383
        %v597 = vpop.f32.mrb[0].mxu0
        %v598 = vadd.f32 0.0, %v597
        %v599 = vpop.f32.mrb[0].mxu0
        %v600 = vadd.f32 0.0, %v599
        %v601 = vpop.f32.mrb[0].mxu0
        %v602 = vadd.f32 0.0, %v601
        %v603 = vpop.f32.mrb[0].mxu0
        %v604 = vadd.f32 0.0, %v603
        %605 = vmatprep.mubr.bf16.mxu0 %v386
        %606 = vmatmul.mubr.bf16.gmra.mrb[0].mxu0 %v385
        %v607 = vpop.f32.mrb[0].mxu0
        %v608 = vadd.f32 0.0, %v607
        %v609 = vpop.f32.mrb[0].mxu0
        %v610 = vadd.f32 0.0, %v609
        %v611 = vpop.f32.mrb[0].mxu0
        %v612 = vadd.f32 0.0, %v611
        %v613 = vpop.f32.mrb[0].mxu0
        %v614 = vadd.f32 0.0, %v613
        %615 = vdwg.mxu0
        %v622 = vunpack.c.l.b16 %v325
        %v623 = vunpack.c.h.b16 %v325
        %v624 = vunpack.c.l.b16 %v326
        %v625 = vunpack.c.h.b16 %v326
        %v626 = vunpack.c.l.b16 %v327
        %v627 = vunpack.c.h.b16 %v327
        %v628 = vunpack.c.l.b16 %v328
        %v629 = vunpack.c.h.b16 %v328
        %v630 = vunpack.c.l.b16 %v329
        %v631 = vunpack.c.h.b16 %v329
        %v632 = vunpack.c.l.b16 %v330
        %v633 = vunpack.c.h.b16 %v330
        %v634 = vpack.c.b16 %v624, %v622
        %v635 = vpack.c.b16 %v625, %v623
        %v636 = vpack.c.b16 %v628, %v626
        %v637 = vpack.c.b16 %v629, %v627
        %v638 = vpack.c.b16 %v632, %v630
        %v639 = vpack.c.b16 %v633, %v631
        %646 = vmatprep.subr.bf16.mxu0 %v490
        %647 = vmatpush1.bf16.msra.mxu0 %v489
        %648 = vmatprep.subr.bf16.mxu0 %v492
        %649 = vmatpush1.bf16.msra.mxu0 %v491
        %650 = vmatprep.subr.bf16.mxu0 %v494
        %651 = vmatpush1.bf16.msra.mxu0 %v493
        %652 = vmatprep.subr.bf16.mxu0 %v496
        %653 = vmatpush1.bf16.msra.mxu0 %v495
        %654 = vmatprep.subr.bf16.mxu0 %v498
        %655 = vmatpush1.bf16.msra.mxu0 %v497
        %656 = vmatprep.subr.bf16.mxu0 %v500
        %657 = vmatpush1.bf16.msra.mxu0 %v499
        %658 = vmatprep.subr.bf16.mxu0 %v502
        %659 = vmatpush1.bf16.msra.mxu0 %v501
        %660 = vmatprep.subr.bf16.mxu0 %v504
        %661 = vmatpush1.bf16.msra.mxu0 %v503
        %662 = vmatprep.subr.bf16.mxu0 %v506
        %663 = vmatpush1.bf16.msra.mxu0 %v505
        %664 = vmatprep.subr.bf16.mxu0 %v508
        %665 = vmatpush1.bf16.msra.mxu0 %v507
        %666 = vmatprep.subr.bf16.mxu0 %v510
        %667 = vmatpush1.bf16.msra.mxu0 %v509
        %668 = vmatprep.subr.bf16.mxu0 %v512
        %669 = vmatpush1.bf16.msra.mxu0 %v511
        %670 = vmatprep.subr.bf16.mxu0 %v514
        %671 = vmatpush1.bf16.msra.mxu0 %v513
        %672 = vmatprep.subr.bf16.mxu0 %v516
        %673 = vmatpush1.bf16.msra.mxu0 %v515
        %674 = vmatprep.subr.bf16.mxu0 %v518
        %675 = vmatpush1.bf16.msra.mxu0 %v517
        %676 = vmatprep.subr.bf16.mxu0 %v520
        %677 = vmatpush1.bf16.msra.mxu0 %v519
        %678 = vmatprep.mubr.bf16.mxu0 %v635
        %679 = vmatmul.mubr.bf16.gmra.mrb[0].mxu0 %v634
        %v680 = vpop.f32.mrb[0].mxu0
        %v681 = vadd.f32 0.0, %v680
        %v682 = vpop.f32.mrb[0].mxu0
        %v683 = vadd.f32 0.0, %v682
        %v684 = vpop.f32.mrb[0].mxu0
        %v685 = vadd.f32 0.0, %v684
        %v686 = vpop.f32.mrb[0].mxu0
        %v687 = vadd.f32 0.0, %v686
        %688 = vmatprep.mubr.bf16.mxu0 %v637
        %689 = vmatmul.mubr.bf16.gmra.mrb[0].mxu0 %v636
        %v690 = vpop.f32.mrb[0].mxu0
        %v691 = vadd.f32 0.0, %v690
        %v692 = vpop.f32.mrb[0].mxu0
        %v693 = vadd.f32 0.0, %v692
        %v694 = vpop.f32.mrb[0].mxu0
        %v695 = vadd.f32 0.0, %v694
        %v696 = vpop.f32.mrb[0].mxu0
        %v697 = vadd.f32 0.0, %v696
        %698 = vmatprep.mubr.bf16.mxu0 %v639
        %699 = vmatmul.mubr.bf16.gmra.mrb[0].mxu0 %v638
        %v700 = vpop.f32.mrb[0].mxu0
        %v701 = vadd.f32 0.0, %v700
        %v702 = vpop.f32.mrb[0].mxu0
        %v703 = vadd.f32 0.0, %v702
        %v704 = vpop.f32.mrb[0].mxu0
        %v705 = vadd.f32 0.0, %v704
        %v706 = vpop.f32.mrb[0].mxu0
        %v707 = vadd.f32 0.0, %v706
        %708 = vdwg.mxu0
        %v709 = vmul.f32 %v588, %v588
        %v710 = vmul.f32 %v592, %v592
        %v711 = vmul.f32 %v598, %v598
        %v712 = vmul.f32 %v602, %v602
        %v713 = vmul.f32 %v608, %v608
        %v714 = vmul.f32 %v612, %v612
        %v715 = vmul.f32 %v590, %v590
        %v716 = vmul.f32 %v594, %v594
        %v717 = vmul.f32 %v600, %v600
        %v718 = vmul.f32 %v604, %v604
        %v719 = vmul.f32 %v610, %v610
        %v720 = vmul.f32 %v614, %v614
        %v721 = vadd.f32 %v709, %v715
        %v722 = vadd.f32 %v710, %v716
        %v723 = vadd.f32 %v711, %v717
        %v724 = vadd.f32 %v712, %v718
        %v725 = vadd.f32 %v713, %v719
        %v726 = vadd.f32 %v714, %v720
        %v727 = vmul.f32 %v681, %v681
        %v728 = vmul.f32 %v685, %v685
        %v729 = vmul.f32 %v691, %v691
        %v730 = vmul.f32 %v695, %v695
        %v731 = vmul.f32 %v701, %v701
        %v732 = vmul.f32 %v705, %v705
        %v733 = vmul.f32 %v683, %v683
        %v734 = vmul.f32 %v687, %v687
        %v735 = vmul.f32 %v693, %v693
        %v736 = vmul.f32 %v697, %v697
        %v737 = vmul.f32 %v703, %v703
        %v738 = vmul.f32 %v707, %v707
        %v739 = vadd.f32 %v727, %v733
        %v740 = vadd.f32 %v728, %v734
        %v741 = vadd.f32 %v729, %v735
        %v742 = vadd.f32 %v730, %v736
        %v743 = vadd.f32 %v731, %v737
        %v744 = vadd.f32 %v732, %v738
        %v745 = vld [vmem:[#allocation2] sm:$0xff]
        %v746 = vld [vmem:[#allocation2 + $0x8] sm:$0xff]
        %v747 = vld [vmem:[#allocation2 + $0x10] sm:$0xff]
        %v748 = vld [vmem:[#allocation2 + $0x18] sm:$0xff]
        %v749 = vld [vmem:[#allocation2 + $0x20] sm:$0xff]
        %v750 = vld [vmem:[#allocation2 + $0x28] sm:$0xff]
        %v751 = vrsqrt.pop %v721
        %v752 = vmul.f32 %v721, %v751
        %vm753 = vcmp.eq.f32.partialorder %v721, inf
        %v754 = vsel %vm753, %v721, %v752
        %vm755 = vcmp.eq.f32.partialorder %v721, 0.0
        %v756 = vand.u32 %v721, 2147483648
        %v757 = vsel %vm755, %v756, %v754
        %v758 = vrsqrt.pop %v722
        %v759 = vmul.f32 %v722, %v758
        %vm760 = vcmp.eq.f32.partialorder %v722, inf
        %v761 = vsel %vm760, %v722, %v759
        %vm762 = vcmp.eq.f32.partialorder %v722, 0.0
        %v763 = vand.u32 %v722, 2147483648
        %v764 = vsel %vm762, %v763, %v761
        %v765 = vrsqrt.pop %v723
        %v766 = vmul.f32 %v723, %v765
        %vm767 = vcmp.eq.f32.partialorder %v723, inf
        %v768 = vsel %vm767, %v723, %v766
        %vm769 = vcmp.eq.f32.partialorder %v723, 0.0
        %v770 = vand.u32 %v723, 2147483648
        %v771 = vsel %vm769, %v770, %v768
        %v772 = vrsqrt.pop %v724
        %v773 = vmul.f32 %v724, %v772
        %vm774 = vcmp.eq.f32.partialorder %v724, inf
        %v775 = vsel %vm774, %v724, %v773
        %vm776 = vcmp.eq.f32.partialorder %v724, 0.0
        %v777 = vand.u32 %v724, 2147483648
        %v778 = vsel %vm776, %v777, %v775
        %v779 = vrsqrt.pop %v725
        %v780 = vmul.f32 %v725, %v779
        %vm781 = vcmp.eq.f32.partialorder %v725, inf
        %v782 = vsel %vm781, %v725, %v780
        %vm783 = vcmp.eq.f32.partialorder %v725, 0.0
        %v784 = vand.u32 %v725, 2147483648
        %v785 = vsel %vm783, %v784, %v782
        %v786 = vrsqrt.pop %v726
        %v787 = vmul.f32 %v726, %v786
        %vm788 = vcmp.eq.f32.partialorder %v726, inf
        %v789 = vsel %vm788, %v726, %v787
        %vm790 = vcmp.eq.f32.partialorder %v726, 0.0
        %v791 = vand.u32 %v726, 2147483648
        %v792 = vsel %vm790, %v791, %v789
        %v793 = vrsqrt.pop %v739
        %v794 = vmul.f32 %v739, %v793
        %vm795 = vcmp.eq.f32.partialorder %v739, inf
        %v796 = vsel %vm795, %v739, %v794
        %vm797 = vcmp.eq.f32.partialorder %v739, 0.0
        %v798 = vand.u32 %v739, 2147483648
        %v799 = vsel %vm797, %v798, %v796
        %v800 = vrsqrt.pop %v740
        %v801 = vmul.f32 %v740, %v800
        %vm802 = vcmp.eq.f32.partialorder %v740, inf
        %v803 = vsel %vm802, %v740, %v801
        %vm804 = vcmp.eq.f32.partialorder %v740, 0.0
        %v805 = vand.u32 %v740, 2147483648
        %v806 = vsel %vm804, %v805, %v803
        %v807 = vrsqrt.pop %v741
        %v808 = vmul.f32 %v741, %v807
        %vm809 = vcmp.eq.f32.partialorder %v741, inf
        %v810 = vsel %vm809, %v741, %v808
        %vm811 = vcmp.eq.f32.partialorder %v741, 0.0
        %v812 = vand.u32 %v741, 2147483648
        %v813 = vsel %vm811, %v812, %v810
        %v814 = vrsqrt.pop %v742
        %v815 = vmul.f32 %v742, %v814
        %vm816 = vcmp.eq.f32.partialorder %v742, inf
        %v817 = vsel %vm816, %v742, %v815
        %vm818 = vcmp.eq.f32.partialorder %v742, 0.0
        %v819 = vand.u32 %v742, 2147483648
        %v820 = vsel %vm818, %v819, %v817
        %v821 = vrsqrt.pop %v743
        %v822 = vmul.f32 %v743, %v821
        %vm823 = vcmp.eq.f32.partialorder %v743, inf
        %v824 = vsel %vm823, %v743, %v822
        %vm825 = vcmp.eq.f32.partialorder %v743, 0.0
        %v826 = vand.u32 %v743, 2147483648
        %v827 = vsel %vm825, %v826, %v824
        %v828 = vrsqrt.pop %v744
        %v829 = vmul.f32 %v744, %v828
        %vm830 = vcmp.eq.f32.partialorder %v744, inf
        %v831 = vsel %vm830, %v744, %v829
        %vm832 = vcmp.eq.f32.partialorder %v744, 0.0
        %v833 = vand.u32 %v744, 2147483648
        %v834 = vsel %vm832, %v833, %v831
        %v835 = vsub.f32 %v757, %v799
        %v836 = vsub.f32 %v764, %v806
        %v837 = vsub.f32 %v771, %v813
        %v838 = vsub.f32 %v778, %v820
        %v839 = vsub.f32 %v785, %v827
        %v840 = vsub.f32 %v792, %v834
        %v841 = vand.u32 2147483647, %v835
        %v842 = vand.u32 2147483647, %v836
        %v843 = vand.u32 2147483647, %v837
        %v844 = vand.u32 2147483647, %v838
        %v845 = vand.u32 2147483647, %v839
        %v846 = vand.u32 2147483647, %v840
        %v847 = vadd.f32 %v745, %v841
        %v848 = vadd.f32 %v746, %v842
        %v849 = vadd.f32 %v747, %v843
        %v850 = vadd.f32 %v748, %v844
        %v851 = vadd.f32 %v749, %v845
        %v852 = vadd.f32 %v750, %v846
        %853 = vst [vmem:[#allocation2] sm:$0xff] %v847
        %854 = vst [vmem:[#allocation2 + $0x8] sm:$0xff] %v848
        %855 = vst [vmem:[#allocation2 + $0x10] sm:$0xff] %v849
        %856 = vst [vmem:[#allocation2 + $0x18] sm:$0xff] %v850
        %857 = vst [vmem:[#allocation2 + $0x20] sm:$0xff] %v851
        %858 = vst [vmem:[#allocation2 + $0x28] sm:$0xff] %v852
        %v859 = vmul.f32 %v588, %v681
        %v860 = vmul.f32 %v592, %v685
        %v861 = vmul.f32 %v598, %v691
        %v862 = vmul.f32 %v602, %v695
        %v863 = vmul.f32 %v608, %v701
        %v864 = vmul.f32 %v612, %v705
        %v865 = vmul.f32 %v590, %v683
        %v866 = vmul.f32 %v594, %v687
        %v867 = vmul.f32 %v600, %v693
        %v868 = vmul.f32 %v604, %v697
        %v869 = vmul.f32 %v610, %v703
        %v870 = vmul.f32 %v614, %v707
        %v871 = vadd.f32 %v859, %v865
        %v872 = vadd.f32 %v860, %v866
        %v873 = vadd.f32 %v861, %v867
        %v874 = vadd.f32 %v862, %v868
        %v875 = vadd.f32 %v863, %v869
        %v876 = vadd.f32 %v864, %v870
        %v877 = vmul.f32 %v721, %v739
        %v878 = vmul.f32 %v722, %v740
        %v879 = vmul.f32 %v723, %v741
        %v880 = vmul.f32 %v724, %v742
        %v881 = vmul.f32 %v725, %v743
        %v882 = vmul.f32 %v726, %v744
        %v883 = vld [vmem:[#allocation3] sm:$0xff]
        %v884 = vld [vmem:[#allocation3 + $0x8] sm:$0xff]
        %v885 = vld [vmem:[#allocation3 + $0x10] sm:$0xff]
        %v886 = vld [vmem:[#allocation3 + $0x18] sm:$0xff]
        %v887 = vld [vmem:[#allocation3 + $0x20] sm:$0xff]
        %v888 = vld [vmem:[#allocation3 + $0x28] sm:$0xff]
        %vm889 = vcmp.gt.f32.partialorder %v877, 0.0
        %vm890 = vcmp.gt.f32.partialorder %v878, 0.0
        %vm891 = vcmp.gt.f32.partialorder %v879, 0.0
        %vm892 = vcmp.gt.f32.partialorder %v880, 0.0
        %vm893 = vcmp.gt.f32.partialorder %v881, 0.0
        %vm894 = vcmp.gt.f32.partialorder %v882, 0.0
        %v895 = vsel %vm889, %v877, 1.0
        %v896 = vsel %vm890, %v878, 1.0
        %v897 = vsel %vm891, %v879, 1.0
        %v898 = vsel %vm892, %v880, 1.0
        %v899 = vsel %vm893, %v881, 1.0
        %v900 = vsel %vm894, %v882, 1.0
        %v901 = vrsqrt.pop %v895
        %v902 = vrsqrt.pop %v896
        %v903 = vrsqrt.pop %v897
        %v904 = vrsqrt.pop %v898
        %v905 = vrsqrt.pop %v899
        %v906 = vrsqrt.pop %v900
        %v907 = vmul.f32 %v871, %v901
        %v908 = vmul.f32 %v872, %v902
        %v909 = vmul.f32 %v873, %v903
        %v910 = vmul.f32 %v874, %v904
        %v911 = vmul.f32 %v875, %v905
        %v912 = vmul.f32 %v876, %v906
        %v913 = vadd.f32 %v883, %v907
        %v914 = vadd.f32 %v884, %v908
        %v915 = vadd.f32 %v885, %v909
        %v916 = vadd.f32 %v886, %v910
        %v917 = vadd.f32 %v887, %v911
        %v918 = vadd.f32 %v888, %v912
        %919 = vst [vmem:[#allocation3] sm:$0xff] %v913
        %920 = vst [vmem:[#allocation3 + $0x8] sm:$0xff] %v914
        %921 = vst [vmem:[#allocation3 + $0x10] sm:$0xff] %v915
        %922 = vst [vmem:[#allocation3 + $0x18] sm:$0xff] %v916
        %923 = vst [vmem:[#allocation3 + $0x20] sm:$0xff] %v917
        %924 = vst [vmem:[#allocation3 + $0x28] sm:$0xff] %v918
        // Predicated region
        $region49: #{tpu_custom_call.1} parent=31 // pred_check
          %p925 = pneg %p303
        $region50: #{tpu_custom_call.1} parent=31 // pred_check_branch
          %927 = sbr.rel (%p925) target = $region52
        $region51: #{tpu_custom_call.1} parent=31 // pred_region
          %v928 = vld [vmem:[#allocation2] sm:$0xff]
          %v929 = vld [vmem:[#allocation2 + $0x8] sm:$0xff]
          %v930 = vld [vmem:[#allocation2 + $0x10] sm:$0xff]
          %v931 = vld [vmem:[#allocation2 + $0x18] sm:$0xff]
          %v932 = vld [vmem:[#allocation2 + $0x20] sm:$0xff]
          %v933 = vld [vmem:[#allocation2 + $0x28] sm:$0xff]
          %v934 = vadd.f32 %v928, %v929
          %v935 = vadd.f32 %v934, %v930
          %v936 = vadd.f32 %v935, %v931
          %v937 = vadd.f32 %v936, %v932
          %v938 = vadd.f32 %v937, %v933
          %v939 = vrot.slane %v938, 4
          %v940 = vadd.f32 %v938, %v939
          %v941 = vrot.slane %v940, 2
          %v942 = vadd.f32 %v940, %v941
          %v943 = vrot.slane %v942, 1
          %v944 = vadd.f32 %v942, %v943
          %945 = vst [vmem:[%s294] sm:$0x1] %v944
          %v946 = vld [vmem:[#allocation3] sm:$0xff]
          %v947 = vld [vmem:[#allocation3 + $0x8] sm:$0xff]
          %v948 = vld [vmem:[#allocation3 + $0x10] sm:$0xff]
          %v949 = vld [vmem:[#allocation3 + $0x18] sm:$0xff]
          %v950 = vld [vmem:[#allocation3 + $0x20] sm:$0xff]
          %v951 = vld [vmem:[#allocation3 + $0x28] sm:$0xff]
          %v952 = vadd.f32 %v946, %v947
          %v953 = vadd.f32 %v952, %v948
          %v954 = vadd.f32 %v953, %v949
          %v955 = vadd.f32 %v954, %v950
          %v956 = vadd.f32 %v955, %v951
          %v957 = vrot.slane %v956, 4
          %v958 = vadd.f32 %v956, %v957
          %v959 = vrot.slane %v958, 2
          %v960 = vadd.f32 %v958, %v959
          %v961 = vrot.slane %v960, 1
          %v962 = vadd.f32 %v960, %v961
          %963 = vst [vmem:[%s300] sm:$0x1] %v962
        $region52: #{tpu_custom_call.1} parent=31 // pred_fallthru
          _
        %s964 = sand.u32 %s125, 1
        %s965 = scalar_lea.sflag [#allocation6], %s964
        %s966 = sand.u32 %s125, 1
        %s967 = scalar_lea.vmem [#allocation10], %s966
        %s968 = sand.u32 %s151, 1
        %s969 = scalar_lea.sflag [#allocation12], %s968
        %s970 = sand.u32 %s151, 1
        %s971 = scalar_lea.vmem [#allocation11], %s970
        // Predicated region
        $region53: #{tpu_custom_call.1} parent=31 // pred_check
          %p972 = pneg %p135
        $region54: #{tpu_custom_call.1} parent=31 // pred_check_branch
          %974 = sbr.rel (%p972) target = $region56
        $region55: #{tpu_custom_call.1} parent=31 // pred_region
          %s976 = ssub.s32 16, 16
          %977 = vsyncadd %s965, %s976
          %s978 = smul.addr %s32, 16
          %s979 = scalar_lea.hbm %s3, %s978
          %s981 = sshll.u32 %s967, 4
          %s982 = int_to_ptr.vmem [resolvable:$true] %s981
          %984 = dma.vmem_to_hbm [thread:$0]  %s982, 16, %s979, %s965
        $region56: #{tpu_custom_call.1} parent=31 // pred_fallthru
          _
        // Predicated region
        $region57: #{tpu_custom_call.1} parent=31 // pred_check
          %p985 = pneg %p161
        $region58: #{tpu_custom_call.1} parent=31 // pred_check_branch
          %987 = sbr.rel (%p985) target = $region60
        $region59: #{tpu_custom_call.1} parent=31 // pred_region
          %s989 = ssub.s32 16, 16
          %990 = vsyncadd %s969, %s989
          %s991 = smul.addr %s32, 16
          %s992 = scalar_lea.hbm %s4, %s991
          %s994 = sshll.u32 %s971, 4
          %s995 = int_to_ptr.vmem [resolvable:$true] %s994
          %997 = dma.vmem_to_hbm [thread:$0]  %s995, 16, %s992, %s969
        $region60: #{tpu_custom_call.1} parent=31 // pred_fallthru
          _
      $region32: #{tpu_custom_call.1} parent=5 // pred_fallthru
        _
      %p998 = scmp.le.s32.totalorder 2, %s23
      // Predicated region
      $region61: #{tpu_custom_call.1} parent=5 // pred_check
        %p999 = pneg %p998
      $region62: #{tpu_custom_call.1} parent=5 // pred_check_branch
        %1001 = sbr.rel (%p999) target = $region64
      $region63: #{tpu_custom_call.1} parent=5 // pred_region
        %s1002 = ssub.s32 %s23, 2
        // Predicated region
        $region65: #{tpu_custom_call.1} parent=63 // pred_check
          %p1003 = pneg %p141
        $region66: #{tpu_custom_call.1} parent=63 // pred_check_branch
          %1005 = sbr.rel (%p1003) target = $region68
        $region67: #{tpu_custom_call.1} parent=63 // pred_region
          %s1006 = sand.u32 %s126, 1
          %s1007 = scalar_lea.sflag [#allocation6], %s1006
          %s1008 = sand.u32 %s126, 1
          %s1009 = scalar_lea.vmem [#allocation10], %s1008
          %1010 = dma.done %s1007, 16
        $region68: #{tpu_custom_call.1} parent=63 // pred_fallthru
          _
        // Predicated region
        $region69: #{tpu_custom_call.1} parent=63 // pred_check
          %p1011 = pneg %p167
        $region70: #{tpu_custom_call.1} parent=63 // pred_check_branch
          %1013 = sbr.rel (%p1011) target = $region72
        $region71: #{tpu_custom_call.1} parent=63 // pred_region
          %s1014 = sand.u32 %s152, 1
          %s1015 = scalar_lea.sflag [#allocation12], %s1014
          %s1016 = sand.u32 %s152, 1
          %s1017 = scalar_lea.vmem [#allocation11], %s1016
          %1018 = dma.done %s1015, 16
        $region72: #{tpu_custom_call.1} parent=63 // pred_fallthru
          _
      $region64: #{tpu_custom_call.1} parent=5 // pred_fallthru
        _
    $region6: #{tpu_custom_call.1} parent=1 // loop_footer
      %s27 = sadd.s32 1, %s23
    $region7: #{tpu_custom_call.1} parent=1 // loop_footer_branch
      %22 = sbr.rel target = $region3
    $region8: #{tpu_custom_call.1} parent=1 // loop_exit
      _
    %1019 = vsyncpa [#allocation5], 1
    %s1020 = scalar_lea.sflag [#allocation5], 1
    %1021 = vsyncpa %s1020, 1
    %1022 = vsyncpa [#allocation8], 1
    %s1023 = scalar_lea.sflag [#allocation8], 1
    %1024 = vsyncpa %s1023, 1
    %1025 = vsyncpa [#allocation6], 1
    %s1026 = scalar_lea.sflag [#allocation6], 1
    %1027 = vsyncpa %s1026, 1
    %1028 = vsyncpa [#allocation12], 1
    %s1029 = scalar_lea.sflag [#allocation12], 1
    %1030 = vsyncpa %s1029, 1

</llo_original>
